<compile_context>
chip_gen: v7x
topology: tpu7x:2x2x1
jax: 0.10.0
libtpu: 0.0.40
codegen_flags: <defaults>
</compile_context>

<pallas_src>
import math

import jax
import jax.numpy as jnp
from jax.experimental import pallas as pl
from jax.experimental.pallas import tpu as pltpu

LOG_STD_MIN = -5.0
LOG_STD_MAX = 2.0


def _round_up(x, m):
    return ((x + m - 1) // m) * m


def actor_kernel(x_ref, w1_ref, b1_ref, w2_ref, b2_ref,
                 wh_ref, bh_ref, scale_ref, bias_ref, eps_ref,
                 am_ref, logprob_ref):
    TB, A = eps_ref.shape
    head_pad = wh_ref.shape[1] // 2  # mean lanes [0:A), log_std lanes [head_pad:head_pad+A)

    x = x_ref[...]

    # fc1 -> relu (bf16 MXU operands, f32 accumulation)
    h1 = jnp.dot(x.astype(jnp.bfloat16), w1_ref[...],
                 preferred_element_type=jnp.float32) + b1_ref[...]
    h1 = jnp.maximum(h1, 0.0)

    # fc2 -> relu
    h2 = jnp.dot(h1.astype(jnp.bfloat16), w2_ref[...],
                 preferred_element_type=jnp.float32) + b2_ref[...]
    h2 = jnp.maximum(h2, 0.0)

    # fused heads: mean in lanes [0:A), log_std in lanes [head_pad:head_pad+A)
    heads = jnp.dot(h2.astype(jnp.bfloat16), wh_ref[...],
                    preferred_element_type=jnp.float32) + bh_ref[...]
    mean = heads[:, :A]                          # lane-offset-0 slice (no relayout)
    log_std = heads[:, head_pad:head_pad + A]    # tile-aligned slice at lane 128

    # squash log_std into [LOG_STD_MIN, LOG_STD_MAX]  (f32 epilogue)
    log_std = jnp.tanh(log_std)
    log_std = LOG_STD_MIN + 0.5 * (LOG_STD_MAX - LOG_STD_MIN) * (log_std + 1.0)
    std = jnp.exp(log_std)

    # reparameterized sample
    eps = eps_ref[...]
    x_t = mean + std * eps
    y_t = jnp.tanh(x_t)

    # (1, A) scale/bias broadcast implicitly in the VPU ops
    scale = scale_ref[...]
    bias = bias_ref[...]

    action = y_t * scale + bias
    mean_sq = jnp.tanh(mean) * scale + bias

    # packed output slab [action | squashed mean]: two direct slice stores,
    # no in-register concatenate
    am_ref[:, :A] = action
    am_ref[:, A:] = mean_sq

    # Normal(mean, std).log_prob(x_t) = -0.5*eps^2 - log_std - 0.5*log(2*pi),
    # minus the tanh-squash correction; the constant term is folded out of the
    # per-element reduction and subtracted once per row.
    lp = -0.5 * eps * eps - log_std - jnp.log(scale * (1.0 - y_t * y_t) + 1e-6)
    lp_row = jnp.sum(lp, axis=1) - A * 0.5 * math.log(2.0 * math.pi)   # (TB,)
    # lane-dense store: row sums land as a (1, TB) block (XLU relayout, idle slot)
    logprob_ref[...] = lp_row[None, :]


def prepare_actor_params(params):
    """One-time (per parameter update) preprocessing of kernel operands.

    Casts the matmul weights to bf16 and builds the fused, 128-lane-padded
    head weight: mean columns in lanes [0:A), log_std in lanes
    [head_pad:head_pad+A), zeros elsewhere.
    """
    A = params["wm"].shape[1]
    H = params["w1"].shape[1]
    head_pad = _round_up(max(A, 1), 128)

    wh = jnp.zeros((H, 2 * head_pad), jnp.float32)
    wh = wh.at[:, :A].set(params["wm"])
    wh = wh.at[:, head_pad:head_pad + A].set(params["wl"])
    bh = jnp.zeros((1, 2 * head_pad), jnp.float32)
    bh = bh.at[:, :A].set(params["bm"])
    bh = bh.at[:, head_pad:head_pad + A].set(params["bl"])

    return dict(
        w1=params["w1"].astype(jnp.bfloat16), b1=params["b1"],
        w2=params["w2"].astype(jnp.bfloat16), b2=params["b2"],
        wh=wh.astype(jnp.bfloat16), bh=bh,
        scale=params["scale"], bias=params["bias"],
    )


def _choose_tile(B, block_b):
    """Batch tile: prefer >= 2 grid blocks (both v7x TensorCores busy) and a
    256-multiple tile when the batch is large enough (fills the MXU M dim);
    always a multiple of 8 (f32 sublane)."""
    half = pl.cdiv(B, 2)
    if half >= 256:
        tb = min(block_b, _round_up(half, 256))
    else:
        tb = min(block_b, _round_up(half, 8))
    tb = max(8, (tb // 8) * 8)
    n_blocks = pl.cdiv(B, tb)
    return tb, n_blocks, n_blocks * tb


def actor_forward(x, prep, eps, *, block_b=1024):
    """prep: output of prepare_actor_params (bf16 weights, padded fused head)."""
    B, OBS = x.shape
    A = prep["scale"].shape[1]
    H = prep["w1"].shape[1]
    W2 = prep["wh"].shape[1]  # 2 * head_pad

    TB, n_blocks, Bp = _choose_tile(B, block_b)
    if Bp != B:
        pad = Bp - B
        x = jnp.pad(x, ((0, pad), (0, 0)))
        eps = jnp.pad(eps, ((0, pad), (0, 0)))

    def batch_spec(d):
        return pl.BlockSpec((TB, d), lambda i: (i, 0))

    def resident_spec(shape):
        return pl.BlockSpec(shape, lambda i: (0, 0))

    out_shapes = (
        jax.ShapeDtypeStruct((Bp, 2 * A), jnp.float32),          # [action | mean]
        jax.ShapeDtypeStruct((n_blocks, 1, TB), jnp.float32),    # log_prob rows
    )
    out_specs = (
        batch_spec(2 * A),
        pl.BlockSpec((None, 1, TB), lambda i: (i, 0, 0)),        # lane-dense row block
    )

    cp_kwargs = dict(dimension_semantics=("parallel",))
    if TB >= 2048:
        # v5e's scoped VMEM default is 16 MiB; give headroom for very large tiles.
        cp_kwargs["vmem_limit_bytes"] = 64 * 1024 * 1024

    am, lp_rows = pl.pallas_call(
        actor_kernel,
        out_shape=out_shapes,
        grid=(n_blocks,),
        in_specs=[
            batch_spec(OBS),            # x
            resident_spec((OBS, H)),    # w1
            resident_spec((1, H)),      # b1
            resident_spec((H, H)),      # w2
            resident_spec((1, H)),      # b2
            resident_spec((H, W2)),     # fused, lane-padded head weights
            resident_spec((1, W2)),     # fused head biases
            resident_spec((1, A)),      # action_scale
            resident_spec((1, A)),      # action_bias
            batch_spec(A),              # eps
        ],
        out_specs=out_specs,
        compiler_params=pltpu.CompilerParams(**cp_kwargs),
    )(x, prep["w1"], prep["b1"], prep["w2"], prep["b2"],
      prep["wh"], prep["bh"], prep["scale"], prep["bias"], eps)

    action = am[:B, :A]
    mean = am[:B, A:]
    log_prob = lp_rows.reshape(Bp, 1)[:B]
    return action, log_prob, mean


def actor_reference(x, params, eps):
    """Pure-JAX reference with the same bf16 matmul operands as the kernel."""
    A = params["wm"].shape[1]
    w1 = params["w1"].astype(jnp.bfloat16)
    w2 = params["w2"].astype(jnp.bfloat16)
    wh = jnp.concatenate([params["wm"], params["wl"]], axis=1).astype(jnp.bfloat16)
    bh = jnp.concatenate([params["bm"], params["bl"]], axis=1)

    h1 = jnp.maximum(jnp.dot(x.astype(jnp.bfloat16), w1,
                             preferred_element_type=jnp.float32)
                     + params["b1"], 0.0)
    h2 = jnp.maximum(jnp.dot(h1.astype(jnp.bfloat16), w2,
                             preferred_element_type=jnp.float32)
                     + params["b2"], 0.0)
    heads = jnp.dot(h2.astype(jnp.bfloat16), wh,
                    preferred_element_type=jnp.float32) + bh
    mean, log_std = heads[:, :A], heads[:, A:]

    log_std = jnp.tanh(log_std)
    log_std = LOG_STD_MIN + 0.5 * (LOG_STD_MAX - LOG_STD_MIN) * (log_std + 1.0)
    std = jnp.exp(log_std)

    x_t = mean + std * eps
    y_t = jnp.tanh(x_t)
    scale, bias = params["scale"], params["bias"]
    action = y_t * scale + bias
    log_prob = -0.5 * eps * eps - log_std - 0.5 * jnp.log(2.0 * jnp.pi)
    log_prob = log_prob - jnp.log(scale * (1.0 - y_t * y_t) + 1e-6)
    log_prob = jnp.sum(log_prob, axis=1, keepdims=True)
    mean_sq = jnp.tanh(mean) * scale + bias
    return action, log_prob, mean_sq


def init_params(key, obs_dim, act_dim, hidden=256):
    """Deterministic init mimicking nn.Linear's uniform(-1/sqrt(fan_in), ...)."""
    ks = jax.random.split(key, 8)

    def linear(kw, kb, fan_in, fan_out):
        bound = 1.0 / jnp.sqrt(fan_in)
        w = jax.random.uniform(kw, (fan_in, fan_out), jnp.float32, -bound, bound)
        b = jax.random.uniform(kb, (1, fan_out), jnp.float32, -bound, bound)
        return w, b

    w1, b1 = linear(ks[0], ks[1], obs_dim, hidden)
    w2, b2 = linear(ks[2], ks[3], hidden, hidden)
    wm, bm = linear(ks[4], ks[5], hidden, act_dim)
    wl, bl = linear(ks[6], ks[7], hidden, act_dim)

    # synthetic env action space: low=-2, high=2  => scale=2, bias=0
    action_low = -2.0 * jnp.ones((act_dim,), jnp.float32)
    action_high = 2.0 * jnp.ones((act_dim,), jnp.float32)
    scale = ((action_high - action_low) / 2.0).reshape(1, act_dim)
    bias = ((action_high + action_low) / 2.0).reshape(1, act_dim)

    return dict(w1=w1, b1=b1, w2=w2, b2=b2, wm=wm, bm=bm, wl=wl, bl=bl,
                scale=scale, bias=bias)


if __name__ == "__main__":
    B, OBS, ACT = 64, 16, 8   # small test shapes; _choose_tile -> TB=32, 2 grid blocks

    key = jax.random.PRNGKey(0)
    k_param, k_x, k_eps = jax.random.split(key, 3)

    params = init_params(k_param, OBS, ACT)
    prep = prepare_actor_params(params)   # hoisted out of the forward path
    x = jax.random.normal(k_x, (B, OBS), jnp.float32)
    eps = jax.random.normal(k_eps, (B, ACT), jnp.float32)

    fwd = jax.jit(lambda xx, ee: actor_forward(xx, prep, ee))
    action, log_prob, mean = jax.block_until_ready(fwd(x, eps))

    assert action.shape == (B, ACT)
    assert log_prob.shape == (B, 1)
    assert mean.shape == (B, ACT)
    assert bool(jnp.all(jnp.isfinite(action)))
    assert bool(jnp.all(jnp.isfinite(log_prob)))
    assert bool(jnp.all(jnp.isfinite(mean)))

    ref_action, ref_log_prob, ref_mean = actor_reference(x, params, eps)
    assert bool(jnp.allclose(action, ref_action, rtol=5e-3, atol=5e-3))
    assert bool(jnp.allclose(log_prob, ref_log_prob, rtol=5e-3, atol=5e-3))
    assert bool(jnp.allclose(mean, ref_mean, rtol=5e-3, atol=5e-3))

    print("KERNEL_OK")
</pallas_src>

<mosaic_0001>
module attributes {stable_mosaic.version = 11 : i64} {
  func.func @actor_kernel(%arg0: i32, %arg1: memref<32x16xf32, #tpu.memory_space<vmem>>, %arg2: memref<16x256xbf16, #tpu.memory_space<vmem>>, %arg3: memref<1x256xf32, #tpu.memory_space<vmem>>, %arg4: memref<256x256xbf16, #tpu.memory_space<vmem>>, %arg5: memref<1x256xf32, #tpu.memory_space<vmem>>, %arg6: memref<256x256xbf16, #tpu.memory_space<vmem>>, %arg7: memref<1x256xf32, #tpu.memory_space<vmem>>, %arg8: memref<1x8xf32, #tpu.memory_space<vmem>>, %arg9: memref<1x8xf32, #tpu.memory_space<vmem>>, %arg10: memref<32x8xf32, #tpu.memory_space<vmem>>, %arg11: memref<32x16xf32, #tpu.memory_space<vmem>>, %arg12: memref<1x1x32xf32, #tpu.memory_space<vmem>>) attributes {dimension_semantics = [#tpu.dimension_semantics<parallel>], iteration_bounds = array<i64: 2>, scalar_prefetch = 0 : i64, scratch_operands = 0 : i64, tpu.core_type = #tpu.core_type<tc>, window_params = [{transform_indices = @transform_0, window_bounds = array<i64: 32, 16>}, {pipeline_mode = #tpu.pipeline_mode<synchronous>, transform_indices = @transform_1, window_bounds = array<i64: 16, 256>}, {pipeline_mode = #tpu.pipeline_mode<synchronous>, transform_indices = @transform_2, window_bounds = array<i64: 1, 256>}, {pipeline_mode = #tpu.pipeline_mode<synchronous>, transform_indices = @transform_3, window_bounds = array<i64: 256, 256>}, {pipeline_mode = #tpu.pipeline_mode<synchronous>, transform_indices = @transform_4, window_bounds = array<i64: 1, 256>}, {pipeline_mode = #tpu.pipeline_mode<synchronous>, transform_indices = @transform_5, window_bounds = array<i64: 256, 256>}, {pipeline_mode = #tpu.pipeline_mode<synchronous>, transform_indices = @transform_6, window_bounds = array<i64: 1, 256>}, {pipeline_mode = #tpu.pipeline_mode<synchronous>, transform_indices = @transform_7, window_bounds = array<i64: 1, 8>}, {pipeline_mode = #tpu.pipeline_mode<synchronous>, transform_indices = @transform_8, window_bounds = array<i64: 1, 8>}, {transform_indices = @transform_9, window_bounds = array<i64: 32, 8>}, {transform_indices = @transform_10, window_bounds = array<i64: 32, 16>}, {transform_indices = @transform_11, window_bounds = array<i64: 1, 1, 32>}]} {
    %c0 = arith.constant 0 : index
    %c0_0 = arith.constant 0 : index
    %0 = vector.load %arg1[%c0, %c0_0] : memref<32x16xf32, #tpu.memory_space<vmem>>, vector<32x16xf32>
    %1 = arith.truncf %0 : vector<32x16xf32> to vector<32x16xbf16>
    %c0_1 = arith.constant 0 : index
    %c0_2 = arith.constant 0 : index
    %2 = vector.load %arg2[%c0_1, %c0_2] : memref<16x256xbf16, #tpu.memory_space<vmem>>, vector<16x256xbf16>
    %cst = arith.constant dense<0.000000e+00> : vector<32x256xf32>
    %3 = tpu.matmul %1, %2, %cst {dimension_numbers = #tpu.dot_dimension_numbers<[1], [0], [0], [1], [0, 0, 1, 1], [], []>} : vector<32x16xbf16>, vector<16x256xbf16>, vector<32x256xf32> -> vector<32x256xf32>
    %c0_3 = arith.constant 0 : index
    %c0_4 = arith.constant 0 : index
    %4 = vector.load %arg3[%c0_3, %c0_4] : memref<1x256xf32, #tpu.memory_space<vmem>>, vector<1x256xf32>
    %5 = vector.broadcast %4 : vector<1x256xf32> to vector<32x256xf32>
    %6 = arith.addf %3, %5 : vector<32x256xf32>
    %cst_5 = arith.constant 0.000000e+00 : f32
    %7 = vector.broadcast %cst_5 : f32 to vector<32x256xf32>
    %8 = arith.maximumf %6, %7 : vector<32x256xf32>
    %9 = arith.truncf %8 : vector<32x256xf32> to vector<32x256xbf16>
    %c0_6 = arith.constant 0 : index
    %c0_7 = arith.constant 0 : index
    %10 = vector.load %arg4[%c0_6, %c0_7] : memref<256x256xbf16, #tpu.memory_space<vmem>>, vector<256x256xbf16>
    %cst_8 = arith.constant dense<0.000000e+00> : vector<32x256xf32>
    %11 = tpu.matmul %9, %10, %cst_8 {dimension_numbers = #tpu.dot_dimension_numbers<[1], [0], [0], [1], [0, 0, 1, 1], [], []>} : vector<32x256xbf16>, vector<256x256xbf16>, vector<32x256xf32> -> vector<32x256xf32>
    %c0_9 = arith.constant 0 : index
    %c0_10 = arith.constant 0 : index
    %12 = vector.load %arg5[%c0_9, %c0_10] : memref<1x256xf32, #tpu.memory_space<vmem>>, vector<1x256xf32>
    %13 = vector.broadcast %12 : vector<1x256xf32> to vector<32x256xf32>
    %14 = arith.addf %11, %13 : vector<32x256xf32>
    %cst_11 = arith.constant 0.000000e+00 : f32
    %15 = vector.broadcast %cst_11 : f32 to vector<32x256xf32>
    %16 = arith.maximumf %14, %15 : vector<32x256xf32>
    %17 = arith.truncf %16 : vector<32x256xf32> to vector<32x256xbf16>
    %c0_12 = arith.constant 0 : index
    %c0_13 = arith.constant 0 : index
    %18 = vector.load %arg6[%c0_12, %c0_13] : memref<256x256xbf16, #tpu.memory_space<vmem>>, vector<256x256xbf16>
    %cst_14 = arith.constant dense<0.000000e+00> : vector<32x256xf32>
    %19 = tpu.matmul %17, %18, %cst_14 {dimension_numbers = #tpu.dot_dimension_numbers<[1], [0], [0], [1], [0, 0, 1, 1], [], []>} : vector<32x256xbf16>, vector<256x256xbf16>, vector<32x256xf32> -> vector<32x256xf32>
    %c0_15 = arith.constant 0 : index
    %c0_16 = arith.constant 0 : index
    %20 = vector.load %arg7[%c0_15, %c0_16] : memref<1x256xf32, #tpu.memory_space<vmem>>, vector<1x256xf32>
    %21 = vector.broadcast %20 : vector<1x256xf32> to vector<32x256xf32>
    %22 = arith.addf %19, %21 : vector<32x256xf32>
    %23 = vector.extract_strided_slice %22 {offsets = [0, 0], sizes = [32, 8], strides = [1, 1]} : vector<32x256xf32> to vector<32x8xf32>
    %24 = vector.extract_strided_slice %22 {offsets = [0, 128], sizes = [32, 8], strides = [1, 1]} : vector<32x256xf32> to vector<32x8xf32>
    %25 = math.tanh %24 : vector<32x8xf32>
    %cst_17 = arith.constant 1.000000e+00 : f32
    %26 = vector.broadcast %cst_17 : f32 to vector<32x8xf32>
    %27 = arith.addf %25, %26 : vector<32x8xf32>
    %cst_18 = arith.constant 3.500000e+00 : f32
    %28 = vector.broadcast %cst_18 : f32 to vector<32x8xf32>
    %29 = arith.mulf %28, %27 : vector<32x8xf32>
    %cst_19 = arith.constant -5.000000e+00 : f32
    %30 = vector.broadcast %cst_19 : f32 to vector<32x8xf32>
    %31 = arith.addf %30, %29 : vector<32x8xf32>
    %32 = math.exp %31 : vector<32x8xf32>
    %c0_20 = arith.constant 0 : index
    %c0_21 = arith.constant 0 : index
    %33 = vector.load %arg10[%c0_20, %c0_21] : memref<32x8xf32, #tpu.memory_space<vmem>>, vector<32x8xf32>
    %34 = arith.mulf %32, %33 : vector<32x8xf32>
    %35 = arith.addf %23, %34 : vector<32x8xf32>
    %36 = math.tanh %35 : vector<32x8xf32>
    %c0_22 = arith.constant 0 : index
    %c0_23 = arith.constant 0 : index
    %37 = vector.load %arg8[%c0_22, %c0_23] : memref<1x8xf32, #tpu.memory_space<vmem>>, vector<1x8xf32>
    %c0_24 = arith.constant 0 : index
    %c0_25 = arith.constant 0 : index
    %38 = vector.load %arg9[%c0_24, %c0_25] : memref<1x8xf32, #tpu.memory_space<vmem>>, vector<1x8xf32>
    %39 = vector.broadcast %37 : vector<1x8xf32> to vector<32x8xf32>
    %40 = arith.mulf %36, %39 : vector<32x8xf32>
    %41 = vector.broadcast %38 : vector<1x8xf32> to vector<32x8xf32>
    %42 = arith.addf %40, %41 : vector<32x8xf32>
    %43 = math.tanh %23 : vector<32x8xf32>
    %44 = vector.broadcast %37 : vector<1x8xf32> to vector<32x8xf32>
    %45 = arith.mulf %43, %44 : vector<32x8xf32>
    %46 = vector.broadcast %38 : vector<1x8xf32> to vector<32x8xf32>
    %47 = arith.addf %45, %46 : vector<32x8xf32>
    %c0_26 = arith.constant 0 : index
    %c0_27 = arith.constant 0 : index
    %48 = vector.load %arg11[%c0_26, %c0_27] : memref<32x16xf32, #tpu.memory_space<vmem>>, vector<32x8xf32>
    tpu.vector_store %arg11[%c0_26, %c0_27], %42 {strides = array<i32>} : memref<32x16xf32, #tpu.memory_space<vmem>>, vector<32x8xf32>,
    %c0_28 = arith.constant 0 : index
    %c8 = arith.constant 8 : index
    %49 = vector.load %arg11[%c0_28, %c8] : memref<32x16xf32, #tpu.memory_space<vmem>>, vector<32x8xf32>
    tpu.vector_store %arg11[%c0_28, %c8], %47 {strides = array<i32>} : memref<32x16xf32, #tpu.memory_space<vmem>>, vector<32x8xf32>,
    %cst_29 = arith.constant -5.000000e-01 : f32
    %50 = vector.broadcast %cst_29 : f32 to vector<32x8xf32>
    %51 = arith.mulf %50, %33 : vector<32x8xf32>
    %52 = arith.mulf %51, %33 : vector<32x8xf32>
    %53 = arith.subf %52, %31 : vector<32x8xf32>
    %54 = arith.mulf %36, %36 : vector<32x8xf32>
    %cst_30 = arith.constant 1.000000e+00 : f32
    %55 = vector.broadcast %cst_30 : f32 to vector<32x8xf32>
    %56 = arith.subf %55, %54 : vector<32x8xf32>
    %57 = vector.broadcast %37 : vector<1x8xf32> to vector<32x8xf32>
    %58 = arith.mulf %57, %56 : vector<32x8xf32>
    %cst_31 = arith.constant 9.99999997E-7 : f32
    %59 = vector.broadcast %cst_31 : f32 to vector<32x8xf32>
    %60 = arith.addf %58, %59 : vector<32x8xf32>
    %61 = math.log %60 : vector<32x8xf32>
    %62 = arith.subf %53, %61 : vector<32x8xf32>
    %cst_32 = arith.constant dense<0.000000e+00> : vector<32xf32>
    %63 = vector.multi_reduction <add>, %62, %cst_32 [1] : vector<32x8xf32> to vector<32xf32>
    %cst_33 = arith.constant 7.35150814 : f32
    %64 = vector.broadcast %cst_33 : f32 to vector<32xf32>
    %65 = arith.subf %63, %64 : vector<32xf32>
    %66 = vector.shape_cast %65 : vector<32xf32> to vector<1x32xf32>
    %c0_34 = arith.constant 0 : index
    %c0_35 = arith.constant 0 : index
    %c0_36 = arith.constant 0 : index
    %67 = vector.load %arg12[%c0_34, %c0_35, %c0_36] : memref<1x1x32xf32, #tpu.memory_space<vmem>>, vector<1x1x32xf32>
    %68 = vector.shape_cast %67 : vector<1x1x32xf32> to vector<1x32xf32>
    %69 = vector.shape_cast %66 : vector<1x32xf32> to vector<1x1x32xf32>
    tpu.vector_store %arg12[%c0_34, %c0_35, %c0_36], %69 {strides = array<i32>} : memref<1x1x32xf32, #tpu.memory_space<vmem>>, vector<1x1x32xf32>,
    return
  }
  func.func @transform_0(%arg0: i32) -> (i32, i32) {
    %c0_i32 = arith.constant 0 : i32
    %c0_i32_0 = arith.constant 0 : i32
    return %arg0, %c0_i32 : i32, i32
  }
  func.func @transform_1(%arg0: i32) -> (i32, i32) {
    %c0_i32 = arith.constant 0 : i32
    %c0_i32_0 = arith.constant 0 : i32
    %c0_i32_1 = arith.constant 0 : i32
    return %c0_i32, %c0_i32_0 : i32, i32
  }
  func.func @transform_2(%arg0: i32) -> (i32, i32) {
    %c0_i32 = arith.constant 0 : i32
    %c0_i32_0 = arith.constant 0 : i32
    %c0_i32_1 = arith.constant 0 : i32
    return %c0_i32, %c0_i32_0 : i32, i32
  }
  func.func @transform_3(%arg0: i32) -> (i32, i32) {
    %c0_i32 = arith.constant 0 : i32
    %c0_i32_0 = arith.constant 0 : i32
    %c0_i32_1 = arith.constant 0 : i32
    return %c0_i32, %c0_i32_0 : i32, i32
  }
  func.func @transform_4(%arg0: i32) -> (i32, i32) {
    %c0_i32 = arith.constant 0 : i32
    %c0_i32_0 = arith.constant 0 : i32
    %c0_i32_1 = arith.constant 0 : i32
    return %c0_i32, %c0_i32_0 : i32, i32
  }
  func.func @transform_5(%arg0: i32) -> (i32, i32) {
    %c0_i32 = arith.constant 0 : i32
    %c0_i32_0 = arith.constant 0 : i32
    %c0_i32_1 = arith.constant 0 : i32
    return %c0_i32, %c0_i32_0 : i32, i32
  }
  func.func @transform_6(%arg0: i32) -> (i32, i32) {
    %c0_i32 = arith.constant 0 : i32
    %c0_i32_0 = arith.constant 0 : i32
    %c0_i32_1 = arith.constant 0 : i32
    return %c0_i32, %c0_i32_0 : i32, i32
  }
  func.func @transform_7(%arg0: i32) -> (i32, i32) {
    %c0_i32 = arith.constant 0 : i32
    %c0_i32_0 = arith.constant 0 : i32
    %c0_i32_1 = arith.constant 0 : i32
    return %c0_i32, %c0_i32_0 : i32, i32
  }
  func.func @transform_8(%arg0: i32) -> (i32, i32) {
    %c0_i32 = arith.constant 0 : i32
    %c0_i32_0 = arith.constant 0 : i32
    %c0_i32_1 = arith.constant 0 : i32
    return %c0_i32, %c0_i32_0 : i32, i32
  }
  func.func @transform_9(%arg0: i32) -> (i32, i32) {
    %c0_i32 = arith.constant 0 : i32
    %c0_i32_0 = arith.constant 0 : i32
    return %arg0, %c0_i32 : i32, i32
  }
  func.func @transform_10(%arg0: i32) -> (i32, i32) {
    %c0_i32 = arith.constant 0 : i32
    %c0_i32_0 = arith.constant 0 : i32
    return %arg0, %c0_i32 : i32, i32
  }
  func.func @transform_11(%arg0: i32) -> (i32, i32, i32) {
    %c0_i32 = arith.constant 0 : i32
    %c0_i32_0 = arith.constant 0 : i32
    %c0_i32_1 = arith.constant 0 : i32
    return %arg0, %c0_i32, %c0_i32_0 : i32, i32, i32
  }
}

</mosaic_0001>

<llo_original>
// kernel: _lambda_.1
$region0: #{_lambda_.1}
  #allocation0 [shape = 'u32[]', space=smem, size = 0x4, offset = 0x4, fixed_abs, tag = 'smem constant byte address 0x4 - core index']
  #allocation1 [shape = 'u32[144,128]{1,0:T(1,128)}', space=vmem, size = 0x12000, scoped, tag = 'internal scratch']
  %s0 = inlined_call_operand.vmem [shape: f32[64,16], index: 0, kind: input, shape index: {}]
  %s1 = inlined_call_operand.vmem [shape: bf16[16,256], index: 1, kind: input, shape index: {}]
  %s2 = inlined_call_operand.vmem [shape: f32[1,256], index: 2, kind: input, shape index: {}]
  %s3 = inlined_call_operand.vmem [shape: bf16[256,256], index: 3, kind: input, shape index: {}]
  %s4 = inlined_call_operand.vmem [shape: f32[1,256], index: 4, kind: input, shape index: {}]
  %s5 = inlined_call_operand.vmem [shape: bf16[256,256], index: 5, kind: input, shape index: {}]
  %s6 = inlined_call_operand.vmem [shape: f32[1,256], index: 6, kind: input, shape index: {}]
  %s7 = inlined_call_operand.vmem [shape: f32[1,8], index: 7, kind: input, shape index: {}]
  %s8 = inlined_call_operand.vmem [shape: f32[1,8], index: 8, kind: input, shape index: {}]
  %s9 = inlined_call_operand.vmem [shape: f32[64,8], index: 9, kind: input, shape index: {}]
  %s10 = inlined_call_operand.vmem [shape: f32[64,16], index: 10, kind: output, shape index: {0}]
  %s11 = inlined_call_operand.vmem [shape: f32[2,1,32], index: 11, kind: output, shape index: {1}]
  %12 = xla_tuple %s10, %s11
  %s13 = sld [smem:[#allocation0]]
  $region81: #{_lambda_.1} parent=0
    _
  %s15 = ssub.s32 1, %s13
  %s16 = scalar_select 0, %s15, %s13
  loop: start=0, step=1, limit=4
  $region2: #{_lambda_.1} parent=0 // loop_pre_header
    _
  $region3: #{_lambda_.1} parent=0 // loop_header
    %s18 = sphi 0, %s22
    %p19 = scmp.ge.s32.totalorder %s18, 4
    %s28 = sphi 0, %s30
    %s31 = sphi 0, %s28
    %s32 = sphi 0, %s31
    %s48 = sphi 0, %s32
    %s52 = sphi 0, %s52
    %s54 = sphi 0, %s52
    %s55 = sphi 0, %s54
    %s69 = sphi 0, %s55
    %s73 = sphi 0, %s73
    %s75 = sphi 0, %s73
    %s76 = sphi 0, %s75
    %s90 = sphi 0, %s76
    %s94 = sphi 0, %s94
    %s96 = sphi 0, %s94
    %s97 = sphi 0, %s96
    %s111 = sphi 0, %s97
    %s115 = sphi 0, %s115
    %s117 = sphi 0, %s115
    %s118 = sphi 0, %s117
    %s132 = sphi 0, %s118
    %s136 = sphi 0, %s136
    %s138 = sphi 0, %s136
    %s139 = sphi 0, %s138
    %s153 = sphi 0, %s139
    %s157 = sphi 0, %s157
    %s159 = sphi 0, %s157
    %s160 = sphi 0, %s159
    %s174 = sphi 0, %s160
    %s178 = sphi 0, %s178
    %s180 = sphi 0, %s178
    %s181 = sphi 0, %s180
    %s195 = sphi 0, %s181
    %s199 = sphi 0, %s199
    %s201 = sphi 0, %s199
    %s202 = sphi 0, %s201
    %s216 = sphi 0, %s202
    %s222 = sphi 0, %s224
    %s225 = sphi 0, %s222
    %s226 = sphi 0, %s225
    %s242 = sphi 0, %s226
    %s248 = sphi 0, %s250
    %s251 = sphi 0, %s248
    %s252 = sphi 0, %s251
    %s268 = sphi 0, %s252
    %s274 = sphi 0, %s276
    %s277 = sphi 0, %s274
    %s278 = sphi 0, %s277
    %s294 = sphi 0, %s278
  $region4: #{_lambda_.1} parent=0 // loop_header_branch
    %21 = sbr.rel (%p19) target = $region8
  $region5: #{_lambda_.1} parent=0 // loop_body
    %s23 = ssub.s32 %s18, 1
    %s24 = ssub.s32 %s18, 2
    %s25 = sadd.s32 %s18, 1
    %s26 = ssub.s32 %s18, %s25
    %p27 = scmp.eq.s32.totalorder %s26, 0
    %s29 = sadd.s32 %s28, 1
    %s30 = scalar_select %p27, %s28, %s29
    %p33 = pneg %p27
    %p34 = scmp.eq.s32.totalorder %s18, 1
    %p35 = por %p33, %p34
    %p36 = scmp.ne.s32.totalorder %s28, %s31
    %p37 = scmp.eq.s32.totalorder %s18, 0
    %p38 = por %p36, %p37
    %p39 = scmp.ne.s32.totalorder %s28, %s31
    %p40 = scmp.eq.s32.totalorder %s23, 1
    %p41 = por %p39, %p40
    %p42 = scmp.ne.s32.totalorder %s31, %s32
    %p43 = scmp.eq.s32.totalorder %s23, 0
    %p44 = por %p42, %p43
    %p45 = scmp.ne.s32.totalorder %s31, %s32
    %p46 = scmp.eq.s32.totalorder %s24, 1
    %p47 = por %p45, %p46
    %p49 = scmp.ne.s32.totalorder %s32, %s48
    %p50 = scmp.eq.s32.totalorder %s24, 0
    %p51 = por %p49, %p50
    %s53 = sadd.s32 %s52, 1
    %p56 = scmp.eq.s32.totalorder %s18, 1
    %p57 = scmp.ne.s32.totalorder %s52, %s54
    %p58 = scmp.eq.s32.totalorder %s18, 0
    %p59 = por %p57, %p58
    %p60 = scmp.ne.s32.totalorder %s52, %s54
    %p61 = scmp.eq.s32.totalorder %s23, 1
    %p62 = por %p60, %p61
    %p63 = scmp.ne.s32.totalorder %s54, %s55
    %p64 = scmp.eq.s32.totalorder %s23, 0
    %p65 = por %p63, %p64
    %p66 = scmp.ne.s32.totalorder %s54, %s55
    %p67 = scmp.eq.s32.totalorder %s24, 1
    %p68 = por %p66, %p67
    %p70 = scmp.ne.s32.totalorder %s55, %s69
    %p71 = scmp.eq.s32.totalorder %s24, 0
    %p72 = por %p70, %p71
    %s74 = sadd.s32 %s73, 1
    %p77 = scmp.eq.s32.totalorder %s18, 1
    %p78 = scmp.ne.s32.totalorder %s73, %s75
    %p79 = scmp.eq.s32.totalorder %s18, 0
    %p80 = por %p78, %p79
    %p81 = scmp.ne.s32.totalorder %s73, %s75
    %p82 = scmp.eq.s32.totalorder %s23, 1
    %p83 = por %p81, %p82
    %p84 = scmp.ne.s32.totalorder %s75, %s76
    %p85 = scmp.eq.s32.totalorder %s23, 0
    %p86 = por %p84, %p85
    %p87 = scmp.ne.s32.totalorder %s75, %s76
    %p88 = scmp.eq.s32.totalorder %s24, 1
    %p89 = por %p87, %p88
    %p91 = scmp.ne.s32.totalorder %s76, %s90
    %p92 = scmp.eq.s32.totalorder %s24, 0
    %p93 = por %p91, %p92
    %s95 = sadd.s32 %s94, 1
    %p98 = scmp.eq.s32.totalorder %s18, 1
    %p99 = scmp.ne.s32.totalorder %s94, %s96
    %p100 = scmp.eq.s32.totalorder %s18, 0
    %p101 = por %p99, %p100
    %p102 = scmp.ne.s32.totalorder %s94, %s96
    %p103 = scmp.eq.s32.totalorder %s23, 1
    %p104 = por %p102, %p103
    %p105 = scmp.ne.s32.totalorder %s96, %s97
    %p106 = scmp.eq.s32.totalorder %s23, 0
    %p107 = por %p105, %p106
    %p108 = scmp.ne.s32.totalorder %s96, %s97
    %p109 = scmp.eq.s32.totalorder %s24, 1
    %p110 = por %p108, %p109
    %p112 = scmp.ne.s32.totalorder %s97, %s111
    %p113 = scmp.eq.s32.totalorder %s24, 0
    %p114 = por %p112, %p113
    %s116 = sadd.s32 %s115, 1
    %p119 = scmp.eq.s32.totalorder %s18, 1
    %p120 = scmp.ne.s32.totalorder %s115, %s117
    %p121 = scmp.eq.s32.totalorder %s18, 0
    %p122 = por %p120, %p121
    %p123 = scmp.ne.s32.totalorder %s115, %s117
    %p124 = scmp.eq.s32.totalorder %s23, 1
    %p125 = por %p123, %p124
    %p126 = scmp.ne.s32.totalorder %s117, %s118
    %p127 = scmp.eq.s32.totalorder %s23, 0
    %p128 = por %p126, %p127
    %p129 = scmp.ne.s32.totalorder %s117, %s118
    %p130 = scmp.eq.s32.totalorder %s24, 1
    %p131 = por %p129, %p130
    %p133 = scmp.ne.s32.totalorder %s118, %s132
    %p134 = scmp.eq.s32.totalorder %s24, 0
    %p135 = por %p133, %p134
    %s137 = sadd.s32 %s136, 1
    %p140 = scmp.eq.s32.totalorder %s18, 1
    %p141 = scmp.ne.s32.totalorder %s136, %s138
    %p142 = scmp.eq.s32.totalorder %s18, 0
    %p143 = por %p141, %p142
    %p144 = scmp.ne.s32.totalorder %s136, %s138
    %p145 = scmp.eq.s32.totalorder %s23, 1
    %p146 = por %p144, %p145
    %p147 = scmp.ne.s32.totalorder %s138, %s139
    %p148 = scmp.eq.s32.totalorder %s23, 0
    %p149 = por %p147, %p148
    %p150 = scmp.ne.s32.totalorder %s138, %s139
    %p151 = scmp.eq.s32.totalorder %s24, 1
    %p152 = por %p150, %p151
    %p154 = scmp.ne.s32.totalorder %s139, %s153
    %p155 = scmp.eq.s32.totalorder %s24, 0
    %p156 = por %p154, %p155
    %s158 = sadd.s32 %s157, 1
    %p161 = scmp.eq.s32.totalorder %s18, 1
    %p162 = scmp.ne.s32.totalorder %s157, %s159
    %p163 = scmp.eq.s32.totalorder %s18, 0
    %p164 = por %p162, %p163
    %p165 = scmp.ne.s32.totalorder %s157, %s159
    %p166 = scmp.eq.s32.totalorder %s23, 1
    %p167 = por %p165, %p166
    %p168 = scmp.ne.s32.totalorder %s159, %s160
    %p169 = scmp.eq.s32.totalorder %s23, 0
    %p170 = por %p168, %p169
    %p171 = scmp.ne.s32.totalorder %s159, %s160
    %p172 = scmp.eq.s32.totalorder %s24, 1
    %p173 = por %p171, %p172
    %p175 = scmp.ne.s32.totalorder %s160, %s174
    %p176 = scmp.eq.s32.totalorder %s24, 0
    %p177 = por %p175, %p176
    %s179 = sadd.s32 %s178, 1
    %p182 = scmp.eq.s32.totalorder %s18, 1
    %p183 = scmp.ne.s32.totalorder %s178, %s180
    %p184 = scmp.eq.s32.totalorder %s18, 0
    %p185 = por %p183, %p184
    %p186 = scmp.ne.s32.totalorder %s178, %s180
    %p187 = scmp.eq.s32.totalorder %s23, 1
    %p188 = por %p186, %p187
    %p189 = scmp.ne.s32.totalorder %s180, %s181
    %p190 = scmp.eq.s32.totalorder %s23, 0
    %p191 = por %p189, %p190
    %p192 = scmp.ne.s32.totalorder %s180, %s181
    %p193 = scmp.eq.s32.totalorder %s24, 1
    %p194 = por %p192, %p193
    %p196 = scmp.ne.s32.totalorder %s181, %s195
    %p197 = scmp.eq.s32.totalorder %s24, 0
    %p198 = por %p196, %p197
    %s200 = sadd.s32 %s199, 1
    %p203 = scmp.eq.s32.totalorder %s18, 1
    %p204 = scmp.ne.s32.totalorder %s199, %s201
    %p205 = scmp.eq.s32.totalorder %s18, 0
    %p206 = por %p204, %p205
    %p207 = scmp.ne.s32.totalorder %s199, %s201
    %p208 = scmp.eq.s32.totalorder %s23, 1
    %p209 = por %p207, %p208
    %p210 = scmp.ne.s32.totalorder %s201, %s202
    %p211 = scmp.eq.s32.totalorder %s23, 0
    %p212 = por %p210, %p211
    %p213 = scmp.ne.s32.totalorder %s201, %s202
    %p214 = scmp.eq.s32.totalorder %s24, 1
    %p215 = por %p213, %p214
    %p217 = scmp.ne.s32.totalorder %s202, %s216
    %p218 = scmp.eq.s32.totalorder %s24, 0
    %p219 = por %p217, %p218
    %s220 = ssub.s32 %s18, %s25
    %p221 = scmp.eq.s32.totalorder %s220, 0
    %s223 = sadd.s32 %s222, 1
    %s224 = scalar_select %p221, %s222, %s223
    %p227 = pneg %p221
    %p228 = scmp.eq.s32.totalorder %s18, 1
    %p229 = por %p227, %p228
    %p230 = scmp.ne.s32.totalorder %s222, %s225
    %p231 = scmp.eq.s32.totalorder %s18, 0
    %p232 = por %p230, %p231
    %p233 = scmp.ne.s32.totalorder %s222, %s225
    %p234 = scmp.eq.s32.totalorder %s23, 1
    %p235 = por %p233, %p234
    %p236 = scmp.ne.s32.totalorder %s225, %s226
    %p237 = scmp.eq.s32.totalorder %s23, 0
    %p238 = por %p236, %p237
    %p239 = scmp.ne.s32.totalorder %s225, %s226
    %p240 = scmp.eq.s32.totalorder %s24, 1
    %p241 = por %p239, %p240
    %p243 = scmp.ne.s32.totalorder %s226, %s242
    %p244 = scmp.eq.s32.totalorder %s24, 0
    %p245 = por %p243, %p244
    %s246 = ssub.s32 %s18, %s25
    %p247 = scmp.eq.s32.totalorder %s246, 0
    %s249 = sadd.s32 %s248, 1
    %s250 = scalar_select %p247, %s248, %s249
    %p253 = pneg %p247
    %p254 = scmp.eq.s32.totalorder %s18, 1
    %p255 = por %p253, %p254
    %p256 = scmp.ne.s32.totalorder %s248, %s251
    %p257 = scmp.eq.s32.totalorder %s18, 0
    %p258 = por %p256, %p257
    %p259 = scmp.ne.s32.totalorder %s248, %s251
    %p260 = scmp.eq.s32.totalorder %s23, 1
    %p261 = por %p259, %p260
    %p262 = scmp.ne.s32.totalorder %s251, %s252
    %p263 = scmp.eq.s32.totalorder %s23, 0
    %p264 = por %p262, %p263
    %p265 = scmp.ne.s32.totalorder %s251, %s252
    %p266 = scmp.eq.s32.totalorder %s24, 1
    %p267 = por %p265, %p266
    %p269 = scmp.ne.s32.totalorder %s252, %s268
    %p270 = scmp.eq.s32.totalorder %s24, 0
    %p271 = por %p269, %p270
    %s272 = ssub.s32 %s18, %s25
    %p273 = scmp.eq.s32.totalorder %s272, 0
    %s275 = sadd.s32 %s274, 1
    %s276 = scalar_select %p273, %s274, %s275
    %p279 = pneg %p273
    %p280 = scmp.eq.s32.totalorder %s18, 1
    %p281 = por %p279, %p280
    %p282 = scmp.ne.s32.totalorder %s274, %s277
    %p283 = scmp.eq.s32.totalorder %s18, 0
    %p284 = por %p282, %p283
    %p285 = scmp.ne.s32.totalorder %s274, %s277
    %p286 = scmp.eq.s32.totalorder %s23, 1
    %p287 = por %p285, %p286
    %p288 = scmp.ne.s32.totalorder %s277, %s278
    %p289 = scmp.eq.s32.totalorder %s23, 0
    %p290 = por %p288, %p289
    %p291 = scmp.ne.s32.totalorder %s277, %s278
    %p292 = scmp.eq.s32.totalorder %s24, 1
    %p293 = por %p291, %p292
    %p295 = scmp.ne.s32.totalorder %s278, %s294
    %p296 = scmp.eq.s32.totalorder %s24, 0
    %p297 = por %p295, %p296
    %p298 = scmp.le.s32.totalorder 1, %s18
    %p299 = scmp.lt.s32.totalorder %s18, 3
    %p300 = pnand %p298, %p299
    %p301 = pneg %p300
    // Predicated region
    $region9: #{_lambda_.1} parent=5 // pred_check
      _
    $region10: #{_lambda_.1} parent=5 // pred_check_branch
      %303 = sbr.rel (%p300) target = $region12
    $region11: #{_lambda_.1} parent=5 // pred_region
      %s304 = ssub.s32 %s18, 1
      // Predicated region
      $region13: #{_lambda_.1} parent=11 // pred_check
        %p305 = pneg %p65
      $region14: #{_lambda_.1} parent=11 // pred_check_branch
        %307 = sbr.rel (%p305) target = $region16
      $region15: #{_lambda_.1} parent=11 // pred_region
        _
      $region16: #{_lambda_.1} parent=11 // pred_fallthru
        _
      // Predicated region
      $region17: #{_lambda_.1} parent=11 // pred_check
        %p308 = pneg %p86
      $region18: #{_lambda_.1} parent=11 // pred_check_branch
        %310 = sbr.rel (%p308) target = $region20
      $region19: #{_lambda_.1} parent=11 // pred_region
        _
      $region20: #{_lambda_.1} parent=11 // pred_fallthru
        _
      // Predicated region
      $region21: #{_lambda_.1} parent=11 // pred_check
        %p311 = pneg %p107
      $region22: #{_lambda_.1} parent=11 // pred_check_branch
        %313 = sbr.rel (%p311) target = $region24
      $region23: #{_lambda_.1} parent=11 // pred_region
        _
      $region24: #{_lambda_.1} parent=11 // pred_fallthru
        _
      // Predicated region
      $region25: #{_lambda_.1} parent=11 // pred_check
        %p314 = pneg %p128
      $region26: #{_lambda_.1} parent=11 // pred_check_branch
        %316 = sbr.rel (%p314) target = $region28
      $region27: #{_lambda_.1} parent=11 // pred_region
        _
      $region28: #{_lambda_.1} parent=11 // pred_fallthru
        _
      // Predicated region
      $region29: #{_lambda_.1} parent=11 // pred_check
        %p317 = pneg %p149
      $region30: #{_lambda_.1} parent=11 // pred_check_branch
        %319 = sbr.rel (%p317) target = $region32
      $region31: #{_lambda_.1} parent=11 // pred_region
        _
      $region32: #{_lambda_.1} parent=11 // pred_fallthru
        _
      // Predicated region
      $region33: #{_lambda_.1} parent=11 // pred_check
        %p320 = pneg %p170
      $region34: #{_lambda_.1} parent=11 // pred_check_branch
        %322 = sbr.rel (%p320) target = $region36
      $region35: #{_lambda_.1} parent=11 // pred_region
        _
      $region36: #{_lambda_.1} parent=11 // pred_fallthru
        _
      // Predicated region
      $region37: #{_lambda_.1} parent=11 // pred_check
        %p323 = pneg %p191
      $region38: #{_lambda_.1} parent=11 // pred_check_branch
        %325 = sbr.rel (%p323) target = $region40
      $region39: #{_lambda_.1} parent=11 // pred_region
        _
      $region40: #{_lambda_.1} parent=11 // pred_fallthru
        _
      // Predicated region
      $region41: #{_lambda_.1} parent=11 // pred_check
        %p326 = pneg %p212
      $region42: #{_lambda_.1} parent=11 // pred_check_branch
        %328 = sbr.rel (%p326) target = $region44
      $region43: #{_lambda_.1} parent=11 // pred_region
        _
      $region44: #{_lambda_.1} parent=11 // pred_fallthru
        _
    $region12: #{_lambda_.1} parent=5 // pred_fallthru
      _
    %p329 = scmp.lt.s32.totalorder %s18, 2
    // Predicated region
    $region45: #{_lambda_.1} parent=5 // pred_check
      %p330 = pneg %p329
    $region46: #{_lambda_.1} parent=5 // pred_check_branch
      %332 = sbr.rel (%p330) target = $region48
    $region47: #{_lambda_.1} parent=5 // pred_region
      // Predicated region
      $region49: #{_lambda_.1} parent=47 // pred_check
        %p333 = pneg %p38
      $region50: #{_lambda_.1} parent=47 // pred_check_branch
        %335 = sbr.rel (%p333) target = $region52
      $region51: #{_lambda_.1} parent=47 // pred_region
        %s336 = smul.u32 4, %s18
        %p337 = scmp.lt.s32.totalorder %s336, 7
        %s338 = scalar_select %p337, %s336, 7
        %s339 = smul.addr %s338, 8
        %s340 = scalar_lea.vmem %s0, %s339
        %s341 = smul.u32 4, %s18
      $region52: #{_lambda_.1} parent=47 // pred_fallthru
        _
      // Predicated region
      $region53: #{_lambda_.1} parent=47 // pred_check
        %p342 = pneg %p232
      $region54: #{_lambda_.1} parent=47 // pred_check_branch
        %344 = sbr.rel (%p342) target = $region56
      $region55: #{_lambda_.1} parent=47 // pred_region
        %s345 = smul.u32 4, %s18
        %p346 = scmp.lt.s32.totalorder %s345, 7
        %s347 = scalar_select %p346, %s345, 7
        %s348 = smul.addr %s347, 8
        %s349 = scalar_lea.vmem %s9, %s348
        %s350 = smul.u32 4, %s18
      $region56: #{_lambda_.1} parent=47 // pred_fallthru
        _
    $region48: #{_lambda_.1} parent=5 // pred_fallthru
      _
    %p351 = scmp.le.s32.totalorder 1, %s18
    %p352 = scmp.lt.s32.totalorder %s18, 3
    %p353 = pnand %p351, %p352
    %p354 = pneg %p353
    // Predicated region
    $region57: #{_lambda_.1} parent=5 // pred_check
      _
    $region58: #{_lambda_.1} parent=5 // pred_check_branch
      %356 = sbr.rel (%p353) target = $region60
    $region59: #{_lambda_.1} parent=5 // pred_region
      %s357 = ssub.s32 %s18, 1
      %s358 = smul.u32 4, %s23
      %p359 = scmp.lt.s32.totalorder %s358, 7
      %s360 = scalar_select %p359, %s358, 7
      %s361 = smul.addr %s360, 8
      %s362 = scalar_lea.vmem %s0, %s361
      %p363 = pneg %p44
      %p364 = pneg %p41
      %p365 = pneg %p65
      %p366 = pneg %p62
      %p367 = pneg %p86
      %p368 = pneg %p83
      %p369 = pneg %p107
      %p370 = pneg %p104
      %p371 = pneg %p128
      %p372 = pneg %p125
      %p373 = pneg %p149
      %p374 = pneg %p146
      %p375 = pneg %p170
      %p376 = pneg %p167
      %p377 = pneg %p191
      %p378 = pneg %p188
      %p379 = pneg %p212
      %p380 = pneg %p209
      %s381 = smul.u32 4, %s23
      %p382 = scmp.lt.s32.totalorder %s381, 7
      %s383 = scalar_select %p382, %s381, 7
      %s384 = smul.addr %s383, 8
      %s385 = scalar_lea.vmem %s9, %s384
      %p386 = pneg %p238
      %p387 = pneg %p235
      %p388 = pneg %p264
      %p389 = pneg %p261
      %s390 = smul.u32 4, %s23
      %p391 = scmp.lt.s32.totalorder %s390, 7
      %s392 = scalar_select %p391, %s390, 7
      %s393 = smul.addr %s392, 8
      %s394 = scalar_lea.vmem %s10, %s393
      %p395 = pneg %p290
      %p396 = pneg %p287
      %p397 = scmp.lt.s32.totalorder %s23, 1
      %s398 = scalar_select %p397, %s23, 1
      %s399 = scalar_lea.vmem %s11, %s398
      %s400 = smul.u32 4, %s23
      %p401 = scmp.lt.s32.totalorder %s400, 7
      %s402 = scalar_select %p401, %s400, 7
      %s403 = smul.addr %s402, 8
      %s404 = scalar_lea.vmem %s0, %s403
      %s405 = smul.u32 4, %s23
      %s406 = smul.u32 4, %s23
      %p407 = scmp.lt.s32.totalorder %s406, 7
      %s408 = scalar_select %p407, %s406, 7
      %s409 = smul.addr %s408, 8
      %s410 = scalar_lea.vmem %s9, %s409
      %s411 = smul.u32 4, %s23
      %s412 = smul.u32 4, %s23
      %p413 = scmp.lt.s32.totalorder %s412, 7
      %s414 = scalar_select %p413, %s412, 7
      %s415 = smul.addr %s414, 8
      %s416 = scalar_lea.vmem %s10, %s415
      %s417 = smul.u32 4, %s23
      %p418 = scmp.lt.s32.totalorder %s23, 1
      %s419 = scalar_select %p418, %s23, 1
      %s420 = scalar_lea.vmem %s11, %s419
      %v422 = vld [vmem:[%s404] sm:$0xff]
      %v423 = vld [vmem:[%s404 + $0x8] sm:$0xff]
      %v424 = vld [vmem:[%s404 + $0x10] sm:$0xff]
      %v425 = vld [vmem:[%s404 + $0x18] sm:$0xff]
      %v426 = vpack.c.bf16 %v423, %v422
      %v427 = vpack.c.bf16 %v425, %v424
      %v428 = vld [vmem:[%s1] sm:$0xff]
      %v429 = vld [vmem:[%s1 + $0x8] sm:$0xff]
      %v430 = vld [vmem:[%s2] sm:$0x3]
      %v432 = vlaneseq
      %v433 = vshrl.u32 %v432, 7
      %v434 = vsub.s32 0, %v433
      %v435 = vrot.slane %v430, %v434
      %v436 = vlaneseq
      %v437 = vshrl.u32 %v436, 7
      %v438 = vsub.s32 1, %v437
      %v439 = vrot.slane %v430, %v438
      %v444 = vunpack.c.l.b16 %v428
      %v445 = vunpack.c.h.b16 %v428
      %v446 = vunpack.c.l.b16 %v429
      %v447 = vunpack.c.h.b16 %v429
      %v448 = vpack.c.b16 %v446, %v444
      %v449 = vpack.c.b16 %v447, %v445
      %vm452 = vcmask 130048
      %v454 = vsel %vm452, %v426, 0
      %v457 = vsel %vm452, %v427, 0
      %459 = vmatprep.subr.bf16.mxu0 %v449
      %460 = vmatpush1.bf16.msra.mxu0 %v448
      %461 = vmatprep.subr.bf16.mxu0 0
      %462 = vmatpush1.bf16.msra.mxu0 0
      %463 = vmatprep.subr.bf16.mxu0 0
      %464 = vmatpush1.bf16.msra.mxu0 0
      %465 = vmatprep.subr.bf16.mxu0 0
      %466 = vmatpush1.bf16.msra.mxu0 0
      %467 = vmatprep.subr.bf16.mxu0 0
      %468 = vmatpush1.bf16.msra.mxu0 0
      %469 = vmatprep.subr.bf16.mxu0 0
      %470 = vmatpush1.bf16.msra.mxu0 0
      %471 = vmatprep.subr.bf16.mxu0 0
      %472 = vmatpush1.bf16.msra.mxu0 0
      %473 = vmatprep.subr.bf16.mxu0 0
      %474 = vmatpush1.bf16.msra.mxu0 0
      %475 = vmatprep.subr.bf16.mxu0 0
      %476 = vmatpush1.bf16.msra.mxu0 0
      %477 = vmatprep.subr.bf16.mxu0 0
      %478 = vmatpush1.bf16.msra.mxu0 0
      %479 = vmatprep.subr.bf16.mxu0 0
      %480 = vmatpush1.bf16.msra.mxu0 0
      %481 = vmatprep.subr.bf16.mxu0 0
      %482 = vmatpush1.bf16.msra.mxu0 0
      %483 = vmatprep.subr.bf16.mxu0 0
      %484 = vmatpush1.bf16.msra.mxu0 0
      %485 = vmatprep.subr.bf16.mxu0 0
      %486 = vmatpush1.bf16.msra.mxu0 0
      %487 = vmatprep.subr.bf16.mxu0 0
      %488 = vmatpush1.bf16.msra.mxu0 0
      %489 = vmatprep.subr.bf16.mxu0 0
      %490 = vmatpush1.bf16.msra.mxu0 0
      %491 = vmatprep.mubr.bf16.mxu0 0
      %492 = vmatmul.mubr.bf16.gmra.mrb[0].mxu0 %v454
      %v493 = vpop.f32.mrb[0].mxu0
      %v494 = vadd.f32 %v435, %v493
      %v495 = vpop.f32.mrb[0].mxu0
      %v496 = vadd.f32 %v439, %v495
      %v497 = vpop.f32.mrb[0].mxu0
      %v498 = vadd.f32 %v435, %v497
      %v499 = vpop.f32.mrb[0].mxu0
      %v500 = vadd.f32 %v439, %v499
      %501 = vmatprep.mubr.bf16.mxu0 0
      %502 = vmatmul.mubr.bf16.gmra.mrb[0].mxu0 %v457
      %v503 = vpop.f32.mrb[0].mxu0
      %v504 = vadd.f32 %v435, %v503
      %v505 = vpop.f32.mrb[0].mxu0
      %v506 = vadd.f32 %v439, %v505
      %v507 = vpop.f32.mrb[0].mxu0
      %v508 = vadd.f32 %v435, %v507
      %v509 = vpop.f32.mrb[0].mxu0
      %v510 = vadd.f32 %v439, %v509
      %511 = vdwg.mxu0
      %v512 = vmax.f32 %v494, 0.0
      %v513 = vmax.f32 %v496, 0.0
      %v514 = vmax.f32 %v498, 0.0
      %v515 = vmax.f32 %v500, 0.0
      %v516 = vmax.f32 %v504, 0.0
      %v517 = vmax.f32 %v506, 0.0
      %v518 = vmax.f32 %v508, 0.0
      %v519 = vmax.f32 %v510, 0.0
      %v520 = vpack.c.bf16 %v514, %v512
      %v521 = vpack.c.bf16 %v515, %v513
      %v522 = vpack.c.bf16 %v518, %v516
      %v523 = vpack.c.bf16 %v519, %v517
      %v524 = vld [vmem:[%s3] sm:$0xff]
      %v525 = vld [vmem:[%s3 + $0x8] sm:$0xff]
      %v526 = vld [vmem:[%s3 + $0x10] sm:$0xff]
      %v527 = vld [vmem:[%s3 + $0x18] sm:$0xff]
      %v528 = vld [vmem:[%s3 + $0x20] sm:$0xff]
      %v529 = vld [vmem:[%s3 + $0x28] sm:$0xff]
      %v530 = vld [vmem:[%s3 + $0x30] sm:$0xff]
      %v531 = vld [vmem:[%s3 + $0x38] sm:$0xff]
      %v532 = vld [vmem:[%s3 + $0x40] sm:$0xff]
      %v533 = vld [vmem:[%s3 + $0x48] sm:$0xff]
      %v534 = vld [vmem:[%s3 + $0x50] sm:$0xff]
      %v535 = vld [vmem:[%s3 + $0x58] sm:$0xff]
      %v536 = vld [vmem:[%s3 + $0x60] sm:$0xff]
      %v537 = vld [vmem:[%s3 + $0x68] sm:$0xff]
      %v538 = vld [vmem:[%s3 + $0x70] sm:$0xff]
      %v539 = vld [vmem:[%s3 + $0x78] sm:$0xff]
      %v540 = vld [vmem:[%s3 + $0x80] sm:$0xff]
      %v541 = vld [vmem:[%s3 + $0x88] sm:$0xff]
      %v542 = vld [vmem:[%s3 + $0x90] sm:$0xff]
      %v543 = vld [vmem:[%s3 + $0x98] sm:$0xff]
      %v544 = vld [vmem:[%s3 + $0xa0] sm:$0xff]
      %v545 = vld [vmem:[%s3 + $0xa8] sm:$0xff]
      %v546 = vld [vmem:[%s3 + $0xb0] sm:$0xff]
      %v547 = vld [vmem:[%s3 + $0xb8] sm:$0xff]
      %v548 = vld [vmem:[%s3 + $0xc0] sm:$0xff]
      %v549 = vld [vmem:[%s3 + $0xc8] sm:$0xff]
      %v550 = vld [vmem:[%s3 + $0xd0] sm:$0xff]
      %v551 = vld [vmem:[%s3 + $0xd8] sm:$0xff]
      %v552 = vld [vmem:[%s3 + $0xe0] sm:$0xff]
      %v553 = vld [vmem:[%s3 + $0xe8] sm:$0xff]
      %v554 = vld [vmem:[%s3 + $0xf0] sm:$0xff]
      %v555 = vld [vmem:[%s3 + $0xf8] sm:$0xff]
      %v556 = vld [vmem:[%s4] sm:$0x3]
      %v558 = vlaneseq
      %v559 = vshrl.u32 %v558, 7
      %v560 = vsub.s32 0, %v559
      %v561 = vrot.slane %v556, %v560
      %v562 = vlaneseq
      %v563 = vshrl.u32 %v562, 7
      %v564 = vsub.s32 1, %v563
      %v565 = vrot.slane %v556, %v564
      %v600 = vunpack.c.l.b16 %v524
      %v601 = vunpack.c.h.b16 %v524
      %v602 = vunpack.c.l.b16 %v525
      %v603 = vunpack.c.h.b16 %v525
      %v604 = vunpack.c.l.b16 %v526
      %v605 = vunpack.c.h.b16 %v526
      %v606 = vunpack.c.l.b16 %v527
      %v607 = vunpack.c.h.b16 %v527
      %v608 = vunpack.c.l.b16 %v528
      %v609 = vunpack.c.h.b16 %v528
      %v610 = vunpack.c.l.b16 %v529
      %v611 = vunpack.c.h.b16 %v529
      %v612 = vunpack.c.l.b16 %v530
      %v613 = vunpack.c.h.b16 %v530
      %v614 = vunpack.c.l.b16 %v531
      %v615 = vunpack.c.h.b16 %v531
      %v616 = vunpack.c.l.b16 %v532
      %v617 = vunpack.c.h.b16 %v532
      %v618 = vunpack.c.l.b16 %v533
      %v619 = vunpack.c.h.b16 %v533
      %v620 = vunpack.c.l.b16 %v534
      %v621 = vunpack.c.h.b16 %v534
      %v622 = vunpack.c.l.b16 %v535
      %v623 = vunpack.c.h.b16 %v535
      %v624 = vunpack.c.l.b16 %v536
      %v625 = vunpack.c.h.b16 %v536
      %v626 = vunpack.c.l.b16 %v537
      %v627 = vunpack.c.h.b16 %v537
      %v628 = vunpack.c.l.b16 %v538
      %v629 = vunpack.c.h.b16 %v538
      %v630 = vunpack.c.l.b16 %v539
      %v631 = vunpack.c.h.b16 %v539
      %v632 = vunpack.c.l.b16 %v540
      %v633 = vunpack.c.h.b16 %v540
      %v634 = vunpack.c.l.b16 %v541
      %v635 = vunpack.c.h.b16 %v541
      %v636 = vunpack.c.l.b16 %v542
      %v637 = vunpack.c.h.b16 %v542
      %v638 = vunpack.c.l.b16 %v543
      %v639 = vunpack.c.h.b16 %v543
      %v640 = vunpack.c.l.b16 %v544
      %v641 = vunpack.c.h.b16 %v544
      %v642 = vunpack.c.l.b16 %v545
      %v643 = vunpack.c.h.b16 %v545
      %v644 = vunpack.c.l.b16 %v546
      %v645 = vunpack.c.h.b16 %v546
      %v646 = vunpack.c.l.b16 %v547
      %v647 = vunpack.c.h.b16 %v547
      %v648 = vunpack.c.l.b16 %v548
      %v649 = vunpack.c.h.b16 %v548
      %v650 = vunpack.c.l.b16 %v549
      %v651 = vunpack.c.h.b16 %v549
      %v652 = vunpack.c.l.b16 %v550
      %v653 = vunpack.c.h.b16 %v550
      %v654 = vunpack.c.l.b16 %v551
      %v655 = vunpack.c.h.b16 %v551
      %v656 = vunpack.c.l.b16 %v552
      %v657 = vunpack.c.h.b16 %v552
      %v658 = vunpack.c.l.b16 %v553
      %v659 = vunpack.c.h.b16 %v553
      %v660 = vunpack.c.l.b16 %v554
      %v661 = vunpack.c.h.b16 %v554
      %v662 = vunpack.c.l.b16 %v555
      %v663 = vunpack.c.h.b16 %v555
      %v664 = vpack.c.b16 %v602, %v600
      %v665 = vpack.c.b16 %v603, %v601
      %v666 = vpack.c.b16 %v606, %v604
      %v667 = vpack.c.b16 %v607, %v605
      %v668 = vpack.c.b16 %v610, %v608
      %v669 = vpack.c.b16 %v611, %v609
      %v670 = vpack.c.b16 %v614, %v612
      %v671 = vpack.c.b16 %v615, %v613
      %v672 = vpack.c.b16 %v618, %v616
      %v673 = vpack.c.b16 %v619, %v617
      %v674 = vpack.c.b16 %v622, %v620
      %v675 = vpack.c.b16 %v623, %v621
      %v676 = vpack.c.b16 %v626, %v624
      %v677 = vpack.c.b16 %v627, %v625
      %v678 = vpack.c.b16 %v630, %v628
      %v679 = vpack.c.b16 %v631, %v629
      %v680 = vpack.c.b16 %v634, %v632
      %v681 = vpack.c.b16 %v635, %v633
      %v682 = vpack.c.b16 %v638, %v636
      %v683 = vpack.c.b16 %v639, %v637
      %v684 = vpack.c.b16 %v642, %v640
      %v685 = vpack.c.b16 %v643, %v641
      %v686 = vpack.c.b16 %v646, %v644
      %v687 = vpack.c.b16 %v647, %v645
      %v688 = vpack.c.b16 %v650, %v648
      %v689 = vpack.c.b16 %v651, %v649
      %v690 = vpack.c.b16 %v654, %v652
      %v691 = vpack.c.b16 %v655, %v653
      %v692 = vpack.c.b16 %v658, %v656
      %v693 = vpack.c.b16 %v659, %v657
      %v694 = vpack.c.b16 %v662, %v660
      %v695 = vpack.c.b16 %v663, %v661
      %728 = vmatprep.subr.bf16.mxu0 %v665
      %729 = vmatpush1.bf16.msra.mxu0 %v664
      %730 = vmatprep.subr.bf16.mxu0 %v667
      %731 = vmatpush1.bf16.msra.mxu0 %v666
      %732 = vmatprep.subr.bf16.mxu0 %v669
      %733 = vmatpush1.bf16.msra.mxu0 %v668
      %734 = vmatprep.subr.bf16.mxu0 %v671
      %735 = vmatpush1.bf16.msra.mxu0 %v670
      %736 = vmatprep.subr.bf16.mxu0 %v673
      %737 = vmatpush1.bf16.msra.mxu0 %v672
      %738 = vmatprep.subr.bf16.mxu0 %v675
      %739 = vmatpush1.bf16.msra.mxu0 %v674
      %740 = vmatprep.subr.bf16.mxu0 %v677
      %741 = vmatpush1.bf16.msra.mxu0 %v676
      %742 = vmatprep.subr.bf16.mxu0 %v679
      %743 = vmatpush1.bf16.msra.mxu0 %v678
      %744 = vmatprep.subr.bf16.mxu0 %v681
      %745 = vmatpush1.bf16.msra.mxu0 %v680
      %746 = vmatprep.subr.bf16.mxu0 %v683
      %747 = vmatpush1.bf16.msra.mxu0 %v682
      %748 = vmatprep.subr.bf16.mxu0 %v685
      %749 = vmatpush1.bf16.msra.mxu0 %v684
      %750 = vmatprep.subr.bf16.mxu0 %v687
      %751 = vmatpush1.bf16.msra.mxu0 %v686
      %752 = vmatprep.subr.bf16.mxu0 %v689
      %753 = vmatpush1.bf16.msra.mxu0 %v688
      %754 = vmatprep.subr.bf16.mxu0 %v691
      %755 = vmatpush1.bf16.msra.mxu0 %v690
      %756 = vmatprep.subr.bf16.mxu0 %v693
      %757 = vmatpush1.bf16.msra.mxu0 %v692
      %758 = vmatprep.subr.bf16.mxu0 %v695
      %759 = vmatpush1.bf16.msra.mxu0 %v694
      %760 = vmatprep.mubr.bf16.mxu0 %v521
      %761 = vmatmul.mubr.bf16.gmra.mrb[0].mxu0 %v520
      %v762 = vpop.f32.mrb[0].mxu0
      %v763 = vadd.f32 %v561, %v762
      %v764 = vpop.f32.mrb[0].mxu0
      %v765 = vadd.f32 %v565, %v764
      %v766 = vpop.f32.mrb[0].mxu0
      %v767 = vadd.f32 %v561, %v766
      %v768 = vpop.f32.mrb[0].mxu0
      %v769 = vadd.f32 %v565, %v768
      %770 = vmatprep.mubr.bf16.mxu0 %v523
      %771 = vmatmul.mubr.bf16.gmra.mrb[0].mxu0 %v522
      %v772 = vpop.f32.mrb[0].mxu0
      %v773 = vadd.f32 %v561, %v772
      %v774 = vpop.f32.mrb[0].mxu0
      %v775 = vadd.f32 %v565, %v774
      %v776 = vpop.f32.mrb[0].mxu0
      %v777 = vadd.f32 %v561, %v776
      %v778 = vpop.f32.mrb[0].mxu0
      %v779 = vadd.f32 %v565, %v778
      %780 = vdwg.mxu0
      %v781 = vmax.f32 %v763, 0.0
      %v782 = vmax.f32 %v765, 0.0
      %v783 = vmax.f32 %v767, 0.0
      %v784 = vmax.f32 %v769, 0.0
      %v785 = vmax.f32 %v773, 0.0
      %v786 = vmax.f32 %v775, 0.0
      %v787 = vmax.f32 %v777, 0.0
      %v788 = vmax.f32 %v779, 0.0
      %v789 = vpack.c.bf16 %v783, %v781
      %v790 = vpack.c.bf16 %v784, %v782
      %v791 = vpack.c.bf16 %v787, %v785
      %v792 = vpack.c.bf16 %v788, %v786
      %v793 = vld [vmem:[%s5] sm:$0xff]
      %v794 = vld [vmem:[%s5 + $0x8] sm:$0xff]
      %v795 = vld [vmem:[%s5 + $0x10] sm:$0xff]
      %v796 = vld [vmem:[%s5 + $0x18] sm:$0xff]
      %v797 = vld [vmem:[%s5 + $0x20] sm:$0xff]
      %v798 = vld [vmem:[%s5 + $0x28] sm:$0xff]
      %v799 = vld [vmem:[%s5 + $0x30] sm:$0xff]
      %v800 = vld [vmem:[%s5 + $0x38] sm:$0xff]
      %v801 = vld [vmem:[%s5 + $0x40] sm:$0xff]
      %v802 = vld [vmem:[%s5 + $0x48] sm:$0xff]
      %v803 = vld [vmem:[%s5 + $0x50] sm:$0xff]
      %v804 = vld [vmem:[%s5 + $0x58] sm:$0xff]
      %v805 = vld [vmem:[%s5 + $0x60] sm:$0xff]
      %v806 = vld [vmem:[%s5 + $0x68] sm:$0xff]
      %v807 = vld [vmem:[%s5 + $0x70] sm:$0xff]
      %v808 = vld [vmem:[%s5 + $0x78] sm:$0xff]
      %v809 = vld [vmem:[%s5 + $0x80] sm:$0xff]
      %v810 = vld [vmem:[%s5 + $0x88] sm:$0xff]
      %v811 = vld [vmem:[%s5 + $0x90] sm:$0xff]
      %v812 = vld [vmem:[%s5 + $0x98] sm:$0xff]
      %v813 = vld [vmem:[%s5 + $0xa0] sm:$0xff]
      %v814 = vld [vmem:[%s5 + $0xa8] sm:$0xff]
      %v815 = vld [vmem:[%s5 + $0xb0] sm:$0xff]
      %v816 = vld [vmem:[%s5 + $0xb8] sm:$0xff]
      %v817 = vld [vmem:[%s5 + $0xc0] sm:$0xff]
      %v818 = vld [vmem:[%s5 + $0xc8] sm:$0xff]
      %v819 = vld [vmem:[%s5 + $0xd0] sm:$0xff]
      %v820 = vld [vmem:[%s5 + $0xd8] sm:$0xff]
      %v821 = vld [vmem:[%s5 + $0xe0] sm:$0xff]
      %v822 = vld [vmem:[%s5 + $0xe8] sm:$0xff]
      %v823 = vld [vmem:[%s5 + $0xf0] sm:$0xff]
      %v824 = vld [vmem:[%s5 + $0xf8] sm:$0xff]
      %v825 = vld [vmem:[%s6] sm:$0x3]
      %v827 = vlaneseq
      %v828 = vshrl.u32 %v827, 7
      %v829 = vsub.s32 0, %v828
      %v830 = vrot.slane %v825, %v829
      %v831 = vlaneseq
      %v832 = vshrl.u32 %v831, 7
      %v833 = vsub.s32 1, %v832
      %v834 = vrot.slane %v825, %v833
      %v869 = vunpack.c.l.b16 %v793
      %v870 = vunpack.c.h.b16 %v793
      %v871 = vunpack.c.l.b16 %v794
      %v872 = vunpack.c.h.b16 %v794
      %v873 = vunpack.c.l.b16 %v795
      %v874 = vunpack.c.h.b16 %v795
      %v875 = vunpack.c.l.b16 %v796
      %v876 = vunpack.c.h.b16 %v796
      %v877 = vunpack.c.l.b16 %v797
      %v878 = vunpack.c.h.b16 %v797
      %v879 = vunpack.c.l.b16 %v798
      %v880 = vunpack.c.h.b16 %v798
      %v881 = vunpack.c.l.b16 %v799
      %v882 = vunpack.c.h.b16 %v799
      %v883 = vunpack.c.l.b16 %v800
      %v884 = vunpack.c.h.b16 %v800
      %v885 = vunpack.c.l.b16 %v801
      %v886 = vunpack.c.h.b16 %v801
      %v887 = vunpack.c.l.b16 %v802
      %v888 = vunpack.c.h.b16 %v802
      %v889 = vunpack.c.l.b16 %v803
      %v890 = vunpack.c.h.b16 %v803
      %v891 = vunpack.c.l.b16 %v804
      %v892 = vunpack.c.h.b16 %v804
      %v893 = vunpack.c.l.b16 %v805
      %v894 = vunpack.c.h.b16 %v805
      %v895 = vunpack.c.l.b16 %v806
      %v896 = vunpack.c.h.b16 %v806
      %v897 = vunpack.c.l.b16 %v807
      %v898 = vunpack.c.h.b16 %v807
      %v899 = vunpack.c.l.b16 %v808
      %v900 = vunpack.c.h.b16 %v808
      %v901 = vunpack.c.l.b16 %v809
      %v902 = vunpack.c.h.b16 %v809
      %v903 = vunpack.c.l.b16 %v810
      %v904 = vunpack.c.h.b16 %v810
      %v905 = vunpack.c.l.b16 %v811
      %v906 = vunpack.c.h.b16 %v811
      %v907 = vunpack.c.l.b16 %v812
      %v908 = vunpack.c.h.b16 %v812
      %v909 = vunpack.c.l.b16 %v813
      %v910 = vunpack.c.h.b16 %v813
      %v911 = vunpack.c.l.b16 %v814
      %v912 = vunpack.c.h.b16 %v814
      %v913 = vunpack.c.l.b16 %v815
      %v914 = vunpack.c.h.b16 %v815
      %v915 = vunpack.c.l.b16 %v816
      %v916 = vunpack.c.h.b16 %v816
      %v917 = vunpack.c.l.b16 %v817
      %v918 = vunpack.c.h.b16 %v817
      %v919 = vunpack.c.l.b16 %v818
      %v920 = vunpack.c.h.b16 %v818
      %v921 = vunpack.c.l.b16 %v819
      %v922 = vunpack.c.h.b16 %v819
      %v923 = vunpack.c.l.b16 %v820
      %v924 = vunpack.c.h.b16 %v820
      %v925 = vunpack.c.l.b16 %v821
      %v926 = vunpack.c.h.b16 %v821
      %v927 = vunpack.c.l.b16 %v822
      %v928 = vunpack.c.h.b16 %v822
      %v929 = vunpack.c.l.b16 %v823
      %v930 = vunpack.c.h.b16 %v823
      %v931 = vunpack.c.l.b16 %v824
      %v932 = vunpack.c.h.b16 %v824
      %v933 = vpack.c.b16 %v871, %v869
      %v934 = vpack.c.b16 %v872, %v870
      %v935 = vpack.c.b16 %v875, %v873
      %v936 = vpack.c.b16 %v876, %v874
      %v937 = vpack.c.b16 %v879, %v877
      %v938 = vpack.c.b16 %v880, %v878
      %v939 = vpack.c.b16 %v883, %v881
      %v940 = vpack.c.b16 %v884, %v882
      %v941 = vpack.c.b16 %v887, %v885
      %v942 = vpack.c.b16 %v888, %v886
      %v943 = vpack.c.b16 %v891, %v889
      %v944 = vpack.c.b16 %v892, %v890
      %v945 = vpack.c.b16 %v895, %v893
      %v946 = vpack.c.b16 %v896, %v894
      %v947 = vpack.c.b16 %v899, %v897
      %v948 = vpack.c.b16 %v900, %v898
      %v949 = vpack.c.b16 %v903, %v901
      %v950 = vpack.c.b16 %v904, %v902
      %v951 = vpack.c.b16 %v907, %v905
      %v952 = vpack.c.b16 %v908, %v906
      %v953 = vpack.c.b16 %v911, %v909
      %v954 = vpack.c.b16 %v912, %v910
      %v955 = vpack.c.b16 %v915, %v913
      %v956 = vpack.c.b16 %v916, %v914
      %v957 = vpack.c.b16 %v919, %v917
      %v958 = vpack.c.b16 %v920, %v918
      %v959 = vpack.c.b16 %v923, %v921
      %v960 = vpack.c.b16 %v924, %v922
      %v961 = vpack.c.b16 %v927, %v925
      %v962 = vpack.c.b16 %v928, %v926
      %v963 = vpack.c.b16 %v931, %v929
      %v964 = vpack.c.b16 %v932, %v930
      %997 = vmatprep.subr.bf16.mxu0 %v934
      %998 = vmatpush1.bf16.msra.mxu0 %v933
      %999 = vmatprep.subr.bf16.mxu0 %v936
      %1000 = vmatpush1.bf16.msra.mxu0 %v935
      %1001 = vmatprep.subr.bf16.mxu0 %v938
      %1002 = vmatpush1.bf16.msra.mxu0 %v937
      %1003 = vmatprep.subr.bf16.mxu0 %v940
      %1004 = vmatpush1.bf16.msra.mxu0 %v939
      %1005 = vmatprep.subr.bf16.mxu0 %v942
      %1006 = vmatpush1.bf16.msra.mxu0 %v941
      %1007 = vmatprep.subr.bf16.mxu0 %v944
      %1008 = vmatpush1.bf16.msra.mxu0 %v943
      %1009 = vmatprep.subr.bf16.mxu0 %v946
      %1010 = vmatpush1.bf16.msra.mxu0 %v945
      %1011 = vmatprep.subr.bf16.mxu0 %v948
      %1012 = vmatpush1.bf16.msra.mxu0 %v947
      %1013 = vmatprep.subr.bf16.mxu0 %v950
      %1014 = vmatpush1.bf16.msra.mxu0 %v949
      %1015 = vmatprep.subr.bf16.mxu0 %v952
      %1016 = vmatpush1.bf16.msra.mxu0 %v951
      %1017 = vmatprep.subr.bf16.mxu0 %v954
      %1018 = vmatpush1.bf16.msra.mxu0 %v953
      %1019 = vmatprep.subr.bf16.mxu0 %v956
      %1020 = vmatpush1.bf16.msra.mxu0 %v955
      %1021 = vmatprep.subr.bf16.mxu0 %v958
      %1022 = vmatpush1.bf16.msra.mxu0 %v957
      %1023 = vmatprep.subr.bf16.mxu0 %v960
      %1024 = vmatpush1.bf16.msra.mxu0 %v959
      %1025 = vmatprep.subr.bf16.mxu0 %v962
      %1026 = vmatpush1.bf16.msra.mxu0 %v961
      %1027 = vmatprep.subr.bf16.mxu0 %v964
      %1028 = vmatpush1.bf16.msra.mxu0 %v963
      %1029 = vmatprep.mubr.bf16.mxu0 %v790
      %1030 = vmatmul.mubr.bf16.gmra.mrb[0].mxu0 %v789
      %v1031 = vpop.f32.mrb[0].mxu0
      %v1032 = vadd.f32 %v830, %v1031
      %v1033 = vpop.f32.mrb[0].mxu0
      %v1034 = vadd.f32 %v834, %v1033
      %v1035 = vpop.f32.mrb[0].mxu0
      %v1036 = vadd.f32 %v830, %v1035
      %v1037 = vpop.f32.mrb[0].mxu0
      %v1038 = vadd.f32 %v834, %v1037
      %1039 = vmatprep.mubr.bf16.mxu0 %v792
      %1040 = vmatmul.mubr.bf16.gmra.mrb[0].mxu0 %v791
      %v1041 = vpop.f32.mrb[0].mxu0
      %v1042 = vadd.f32 %v830, %v1041
      %v1043 = vpop.f32.mrb[0].mxu0
      %v1044 = vadd.f32 %v834, %v1043
      %v1045 = vpop.f32.mrb[0].mxu0
      %v1046 = vadd.f32 %v830, %v1045
      %v1047 = vpop.f32.mrb[0].mxu0
      %v1048 = vadd.f32 %v834, %v1047
      %1049 = vdwg.mxu0
      %v1050 = vtanh.pop %v1034
      %v1051 = vtanh.pop %v1038
      %v1052 = vtanh.pop %v1044
      %v1053 = vtanh.pop %v1048
      %v1054 = vadd.f32 %v1050, 1.0
      %v1055 = vadd.f32 %v1051, 1.0
      %v1056 = vadd.f32 %v1052, 1.0
      %v1057 = vadd.f32 %v1053, 1.0
      %v1058 = vmul.f32 %v1054, 3.5
      %v1059 = vmul.f32 %v1055, 3.5
      %v1060 = vmul.f32 %v1056, 3.5
      %v1061 = vmul.f32 %v1057, 3.5
      %v1062 = vadd.f32 %v1058, -5.0
      %v1063 = vadd.f32 %v1059, -5.0
      %v1064 = vadd.f32 %v1060, -5.0
      %v1065 = vadd.f32 %v1061, -5.0
      %v1066 = vmul.f32 %v1062, 1.442695
      %v1067 = vpow.pop %v1066
      %v1068 = vmul.f32 %v1063, 1.442695
      %v1069 = vpow.pop %v1068
      %v1070 = vmul.f32 %v1064, 1.442695
      %v1071 = vpow.pop %v1070
      %v1072 = vmul.f32 %v1065, 1.442695
      %v1073 = vpow.pop %v1072
      %v1074 = vld [vmem:[%s410] sm:$0xff]
      %v1075 = vld [vmem:[%s410 + $0x8] sm:$0xff]
      %v1076 = vld [vmem:[%s410 + $0x10] sm:$0xff]
      %v1077 = vld [vmem:[%s410 + $0x18] sm:$0xff]
      %v1078 = vmul.f32 %v1067, %v1074
      %v1079 = vmul.f32 %v1069, %v1075
      %v1080 = vmul.f32 %v1071, %v1076
      %v1081 = vmul.f32 %v1073, %v1077
      %v1082 = vadd.f32 %v1032, %v1078
      %v1083 = vadd.f32 %v1036, %v1079
      %v1084 = vadd.f32 %v1042, %v1080
      %v1085 = vadd.f32 %v1046, %v1081
      %v1086 = vtanh.pop %v1082
      %v1087 = vtanh.pop %v1083
      %v1088 = vtanh.pop %v1084
      %v1089 = vtanh.pop %v1085
      %v1090 = vld [vmem:[%s7] sm:$0x1]
      %v1091 = vld [vmem:[%s8] sm:$0x1]
      %v1093 = vlaneseq
      %v1094 = vshrl.u32 %v1093, 7
      %v1095 = vsub.s32 0, %v1094
      %v1096 = vrot.slane %v1090, %v1095
      %v1098 = vmul.f32 %v1086, %v1096
      %v1099 = vmul.f32 %v1087, %v1096
      %v1100 = vmul.f32 %v1088, %v1096
      %v1101 = vmul.f32 %v1089, %v1096
      %v1103 = vlaneseq
      %v1104 = vshrl.u32 %v1103, 7
      %v1105 = vsub.s32 0, %v1104
      %v1106 = vrot.slane %v1091, %v1105
      %v1108 = vadd.f32 %v1098, %v1106
      %v1109 = vadd.f32 %v1099, %v1106
      %v1110 = vadd.f32 %v1100, %v1106
      %v1111 = vadd.f32 %v1101, %v1106
      %v1112 = vtanh.pop %v1032
      %v1113 = vtanh.pop %v1036
      %v1114 = vtanh.pop %v1042
      %v1115 = vtanh.pop %v1046
      %v1116 = vmul.f32 %v1112, %v1096
      %v1117 = vmul.f32 %v1113, %v1096
      %v1118 = vmul.f32 %v1114, %v1096
      %v1119 = vmul.f32 %v1115, %v1096
      %v1120 = vadd.f32 %v1116, %v1106
      %v1121 = vadd.f32 %v1117, %v1106
      %v1122 = vadd.f32 %v1118, %v1106
      %v1123 = vadd.f32 %v1119, %v1106
      %vm1124 = vcmask 64512
      %1125 = vst.msk [vmem:[%s416] sm:$0xff] %vm1124, %v1108
      %1126 = vst.msk [vmem:[%s416 + $0x8] sm:$0xff] %vm1124, %v1109
      %1127 = vst.msk [vmem:[%s416 + $0x10] sm:$0xff] %vm1124, %v1110
      %1128 = vst.msk [vmem:[%s416 + $0x18] sm:$0xff] %vm1124, %v1111
      %1133 = vrot.lane.b32.xlu0 %v1120, 8
      %v1134 = vpop.permute.xlu0 %1133
      %1135 = vrot.lane.b32.xlu0 %v1121, 8
      %v1136 = vpop.permute.xlu0 %1135
      %1137 = vrot.lane.b32.xlu0 %v1122, 8
      %v1138 = vpop.permute.xlu0 %1137
      %1139 = vrot.lane.b32.xlu0 %v1123, 8
      %v1140 = vpop.permute.xlu0 %1139
      %vm1145 = vcmask 130112
      %1146 = vst.msk [vmem:[%s416] sm:$0xff] %vm1145, %v1134
      %1147 = vst.msk [vmem:[%s416 + $0x8] sm:$0xff] %vm1145, %v1136
      %1148 = vst.msk [vmem:[%s416 + $0x10] sm:$0xff] %vm1145, %v1138
      %1149 = vst.msk [vmem:[%s416 + $0x18] sm:$0xff] %vm1145, %v1140
      %v1150 = vmul.f32 %v1074, -0.5
      %v1151 = vmul.f32 %v1075, -0.5
      %v1152 = vmul.f32 %v1076, -0.5
      %v1153 = vmul.f32 %v1077, -0.5
      %v1154 = vmul.f32 %v1150, %v1074
      %v1155 = vmul.f32 %v1151, %v1075
      %v1156 = vmul.f32 %v1152, %v1076
      %v1157 = vmul.f32 %v1153, %v1077
      %v1158 = vsub.f32 %v1154, %v1062
      %v1159 = vsub.f32 %v1155, %v1063
      %v1160 = vsub.f32 %v1156, %v1064
      %v1161 = vsub.f32 %v1157, %v1065
      %v1162 = vmul.f32 %v1086, %v1086
      %v1163 = vmul.f32 %v1087, %v1087
      %v1164 = vmul.f32 %v1088, %v1088
      %v1165 = vmul.f32 %v1089, %v1089
      %v1166 = vsub.f32 1.0, %v1162
      %v1167 = vsub.f32 1.0, %v1163
      %v1168 = vsub.f32 1.0, %v1164
      %v1169 = vsub.f32 1.0, %v1165
      %v1170 = vmul.f32 %v1096, %v1166
      %v1171 = vmul.f32 %v1096, %v1167
      %v1172 = vmul.f32 %v1096, %v1168
      %v1173 = vmul.f32 %v1096, %v1169
      %v1174 = vadd.f32 %v1170, 1e-06
      %v1175 = vadd.f32 %v1171, 1e-06
      %v1176 = vadd.f32 %v1172, 1e-06
      %v1177 = vadd.f32 %v1173, 1e-06
      %v1178 = vlog2.pop %v1174
      %v1179 = vmul.f32 %v1178, 0.6931472
      %v1180 = vlog2.pop %v1175
      %v1181 = vmul.f32 %v1180, 0.6931472
      %v1182 = vlog2.pop %v1176
      %v1183 = vmul.f32 %v1182, 0.6931472
      %v1184 = vlog2.pop %v1177
      %v1185 = vmul.f32 %v1184, 0.6931472
      %v1186 = vsub.f32 %v1158, %v1179
      %v1187 = vsub.f32 %v1159, %v1181
      %v1188 = vsub.f32 %v1160, %v1183
      %v1189 = vsub.f32 %v1161, %v1185
      %v1190 = vsel %vm1124, %v1186, 0.0
      %1191 = vadd.xlane.f32.xlu0 %v1190
      %v1192 = vpop.xlane.xlu0 %1191
      %v1193 = vsel %vm1124, %v1187, 0.0
      %1194 = vadd.xlane.f32.xlu0 %v1193
      %v1195 = vpop.xlane.xlu0 %1194
      %v1196 = vsel %vm1124, %v1188, 0.0
      %1197 = vadd.xlane.f32.xlu0 %v1196
      %v1198 = vpop.xlane.xlu0 %1197
      %v1199 = vsel %vm1124, %v1189, 0.0
      %1200 = vadd.xlane.f32.xlu0 %v1199
      %v1201 = vpop.xlane.xlu0 %1200
      %v1202 = vsub.f32 %v1192, 7.351508
      %v1203 = vsub.f32 %v1195, 7.351508
      %v1204 = vsub.f32 %v1198, 7.351508
      %v1205 = vsub.f32 %v1201, 7.351508
      %v1210 = vlaneseq
      %v1211 = vand.u32 %v1210, 127
      %v1212 = vlaneseq
      %v1213 = vshrl.u32 %v1212, 7
      %v1214 = vsub.s32 %v1211, %v1213
      %v1215 = vrot.slane %v1202, %v1214
      %v1216 = vadd.s32 %v1211, 4294967288
      %v1217 = vlaneseq
      %v1218 = vshrl.u32 %v1217, 7
      %v1219 = vsub.s32 %v1216, %v1218
      %v1220 = vrot.slane %v1203, %v1219
      %v1221 = vsel %vm1145, %v1220, %v1215
      %v1222 = vadd.s32 %v1211, 4294967280
      %v1223 = vlaneseq
      %v1224 = vshrl.u32 %v1223, 7
      %v1225 = vsub.s32 %v1222, %v1224
      %v1226 = vrot.slane %v1204, %v1225
      %vm1227 = vcmask 195712
      %v1228 = vsel %vm1227, %v1226, %v1221
      %v1229 = vadd.s32 %v1211, 4294967272
      %v1230 = vlaneseq
      %v1231 = vshrl.u32 %v1230, 7
      %v1232 = vsub.s32 %v1229, %v1231
      %v1233 = vrot.slane %v1205, %v1232
      %vm1234 = vcmask 261312
      %v1235 = vsel %vm1234, %v1233, %v1228
      %vm1237 = vcmask 253952
      %1238 = vst.msk [vmem:[%s420] sm:$0x1] %vm1237, %v1235
      %s1239 = smul.u32 4, %s23
      %p1240 = scmp.lt.s32.totalorder %s1239, 7
      %s1241 = scalar_select %p1240, %s1239, 7
      %s1242 = smul.addr %s1241, 8
      %s1243 = scalar_lea.vmem %s10, %s1242
      %p1244 = scmp.lt.s32.totalorder %s23, 1
      %s1245 = scalar_select %p1244, %s23, 1
      %s1246 = scalar_lea.vmem %s11, %s1245
      // Predicated region
      $region61: #{_lambda_.1} parent=59 // pred_check
        %p1247 = pneg %p261
      $region62: #{_lambda_.1} parent=59 // pred_check_branch
        %1249 = sbr.rel (%p1247) target = $region64
      $region63: #{_lambda_.1} parent=59 // pred_region
        %s1250 = smul.u32 4, %s23
      $region64: #{_lambda_.1} parent=59 // pred_fallthru
        _
      // Predicated region
      $region65: #{_lambda_.1} parent=59 // pred_check
        %p1251 = pneg %p287
      $region66: #{_lambda_.1} parent=59 // pred_check_branch
        %1253 = sbr.rel (%p1251) target = $region68
      $region67: #{_lambda_.1} parent=59 // pred_region
        _
      $region68: #{_lambda_.1} parent=59 // pred_fallthru
        _
    $region60: #{_lambda_.1} parent=5 // pred_fallthru
      _
    %p1254 = scmp.le.s32.totalorder 2, %s18
    // Predicated region
    $region69: #{_lambda_.1} parent=5 // pred_check
      %p1255 = pneg %p1254
    $region70: #{_lambda_.1} parent=5 // pred_check_branch
      %1257 = sbr.rel (%p1255) target = $region72
    $region71: #{_lambda_.1} parent=5 // pred_region
      %s1258 = ssub.s32 %s18, 2
      // Predicated region
      $region73: #{_lambda_.1} parent=71 // pred_check
        %p1259 = pneg %p267
      $region74: #{_lambda_.1} parent=71 // pred_check_branch
        %1261 = sbr.rel (%p1259) target = $region76
      $region75: #{_lambda_.1} parent=71 // pred_region
        %s1262 = smul.u32 4, %s24
        %p1263 = scmp.lt.s32.totalorder %s1262, 7
        %s1264 = scalar_select %p1263, %s1262, 7
        %s1265 = smul.addr %s1264, 8
        %s1266 = scalar_lea.vmem %s10, %s1265
      $region76: #{_lambda_.1} parent=71 // pred_fallthru
        _
      // Predicated region
      $region77: #{_lambda_.1} parent=71 // pred_check
        %p1267 = pneg %p293
      $region78: #{_lambda_.1} parent=71 // pred_check_branch
        %1269 = sbr.rel (%p1267) target = $region80
      $region79: #{_lambda_.1} parent=71 // pred_region
        %p1270 = scmp.lt.s32.totalorder %s24, 1
        %s1271 = scalar_select %p1270, %s24, 1
        %s1272 = scalar_lea.vmem %s11, %s1271
      $region80: #{_lambda_.1} parent=71 // pred_fallthru
        _
    $region72: #{_lambda_.1} parent=5 // pred_fallthru
      _
  $region6: #{_lambda_.1} parent=0 // loop_footer
    %s22 = sadd.s32 1, %s18
  $region7: #{_lambda_.1} parent=0 // loop_footer_branch
    %17 = sbr.rel target = $region3
  $region8: #{_lambda_.1} parent=0 // loop_exit
    _

</llo_original>
